<compile_context>
chip_gen: v7x
topology: tpu7x:2x2x1
jax: 0.10.0
libtpu: 0.0.40
codegen_flags: <defaults>
</compile_context>

<pallas_src>
import math
import functools

import jax
import jax.numpy as jnp
from jax import lax
from jax.experimental import pallas as pl
from jax.experimental.pallas import tpu as pltpu


# ----------------------------- Pallas kernels -------------------------------- #

def _sparsity_measure_kernel(countsT_ref, q_ref, k_ref, m_ref, max_s, sum_s, *, inv_LK):
    """Per (b*h, k-tile): accumulate sampled max / sampled weighted-sum of S.

    Works on S^T tiles (K_tile @ Q^T) so the reductions over keys run along the
    sublane axis and the result is naturally lane-dense ([1, L_Q]) -- no relayout
    and no lane-width-1 partial stores.
    """
    t = pl.program_id(1)

    @pl.when(t == 0)
    def _init():
        max_s[...] = jnp.full_like(max_s, -jnp.inf)
        sum_s[...] = jnp.zeros_like(sum_s)

    q = q_ref[0].astype(jnp.bfloat16)            # [L_Q, D]
    k = k_ref[0]                                 # [TK, D]  (bf16)
    # S^T tile on the MXU, f32 accumulation: [TK, L_Q]
    st = lax.dot_general(k, q, (((1,), (1,)), ((), ())),
                         preferred_element_type=jnp.float32)
    cnt = countsT_ref[...].astype(jnp.float32)   # [TK, L_Q] sample multiplicities

    sum_s[...] += jnp.sum(st * cnt, axis=0, keepdims=True)
    tile_max = jnp.max(jnp.where(cnt > 0.0, st, -jnp.inf), axis=0, keepdims=True)
    max_s[...] = jnp.maximum(max_s[...], tile_max)

    @pl.when(t == pl.num_programs(1) - 1)
    def _finish():
        # M[q] = max_{sampled} S[q, k] - (1/L_K) * sum_{sampled} S[q, k]
        m_ref[0] = max_s[...] - sum_s[...] * inv_LK          # lane-dense [1, L_Q]


def _context_kernel(idx_ref, q_ref, k_ref, v_ref, ctx_ref, attn_ref,
                    qred_s, ctx_s, attn_s, *, scale, u):
    """Per (b*h): gather top-u queries, softmax(Q_r K^T * scale) @ V, scatter rows."""
    g = pl.program_id(0)
    L_Q = q_ref.shape[1]
    L_V = v_ref.shape[1]
    D = v_ref.shape[2]

    # ---- gather the u selected query rows (indices scalar-prefetched into SMEM) ----
    def _gather(i, carry):
        j = idx_ref[g, i]
        qred_s[pl.ds(i, 1), :] = q_ref[0, pl.ds(j, 1), :]
        return carry
    lax.fori_loop(0, u, _gather, 0, unroll=True)

    k = k_ref[0]                                             # [L_K, D] bf16
    v32 = v_ref[0].astype(jnp.float32)                       # [L_V, D] f32

    # scores_top = Q_reduce @ K^T (recomputed in-kernel; S never hits HBM)
    scores = lax.dot_general(qred_s[...].astype(jnp.bfloat16), k,
                             (((1,), (1,)), ((), ())),
                             preferred_element_type=jnp.float32) * scale   # [u, L_K]

    mx = jnp.max(scores, axis=-1, keepdims=True)
    e = jnp.exp(scores - mx)
    attn = e / jnp.sum(e, axis=-1, keepdims=True)            # [u, L_K] f32
    attn_s[...] = attn
    ctx_s[...] = lax.dot_general(attn, v32, (((1,), (0,)), ((), ())),
                                 preferred_element_type=jnp.float32)       # [u, D]

    # ---- initial context (mean of V) and uniform attention base ----
    v_mean = jnp.mean(v32, axis=0, keepdims=True)            # [1, D]
    ctx_ref[0] = jnp.broadcast_to(v_mean, (L_Q, D))
    attn_ref[0] = jnp.full((L_Q, L_V), 1.0 / L_V, dtype=jnp.float32)

    # ---- scatter the u updated rows at the selected query positions ----
    def _scatter(i, carry):
        j = idx_ref[g, i]
        ctx_ref[0, pl.ds(j, 1), :] = ctx_s[pl.ds(i, 1), :]
        attn_ref[0, pl.ds(j, 1), :] = attn_s[pl.ds(i, 1), :]
        return carry
    lax.fori_loop(0, u, _scatter, 0, unroll=True)


# ------------------------------ Python wrapper -------------------------------- #

def _pick_k_tile(L_K, max_tile=512):
    """Largest L_K tile that is the full dim or a 128-multiple divisor <= max_tile."""
    if L_K <= max_tile or L_K % 128 != 0:
        return L_K
    for t in range(max_tile, 127, -128):
        if L_K % t == 0:
            return t
    return L_K


def prob_attention(queries, keys, values, index_sample, *, factor=5, scale=None):
    """ProbAttention forward (mask_flag=False, output_attention=True).

    queries/keys/values: [B, L, H, D] (PyTorch layout).
    index_sample: [L_Q, sample_k] random key indices (shared across B, H, like
    torch.randint in the reference implementation).
    Returns (context [B, L_Q, H, D], attn [B, H, L_V, L_V]); assumes L_Q == L_V
    for the attention map, as the torch code implicitly does.
    """
    B, L_Q, H, D = queries.shape
    _, L_K, _, _ = keys.shape
    L_V = L_K
    BH = B * H

    def to_flat(x, L):   # [B, L, H, D] -> [B*H, L, D]
        return jnp.transpose(x, (0, 2, 1, 3)).reshape(BH, L, D)

    # Q stays f32 (dynamic row gather source in kernel 2); K/V go bf16 for the MXU.
    Qf = to_flat(queries, L_Q).astype(jnp.float32)
    Kb = to_flat(keys, L_K).astype(jnp.bfloat16)
    Vb = to_flat(values, L_V).astype(jnp.bfloat16)

    u = min(factor * int(math.ceil(math.log(L_Q))), L_Q)

    # transposed sample-multiplicity matrix: countsT[k, q] = #times key k sampled for q
    countsT = jnp.zeros((L_K, L_Q), jnp.float32).at[
        index_sample, jnp.arange(L_Q)[:, None]].add(1.0).astype(jnp.bfloat16)

    TK = _pick_k_tile(L_K)
    n_kt = L_K // TK

    # --- Kernel 1: sparsity measure M (Q K^T never materialized to HBM) ---
    m3 = pl.pallas_call(
        functools.partial(_sparsity_measure_kernel, inv_LK=1.0 / float(L_K)),
        out_shape=jax.ShapeDtypeStruct((BH, 1, L_Q), jnp.float32),
        grid_spec=pltpu.PrefetchScalarGridSpec(
            num_scalar_prefetch=0,
            grid=(BH, n_kt),
            in_specs=[pl.BlockSpec((TK, L_Q), lambda g, t: (t, 0)),
                      pl.BlockSpec((1, L_Q, D), lambda g, t: (g, 0, 0)),
                      pl.BlockSpec((1, TK, D), lambda g, t: (g, t, 0))],
            out_specs=pl.BlockSpec((1, 1, L_Q), lambda g, t: (g, 0, 0)),
            scratch_shapes=[pltpu.VMEM((1, L_Q), jnp.float32),
                            pltpu.VMEM((1, L_Q), jnp.float32)]),
        compiler_params=pltpu.CompilerParams(
            dimension_semantics=("parallel", "arbitrary"),
            vmem_limit_bytes=48 * 1024 * 1024),
    )(countsT, Qf, Kb)
    M = m3[:, 0, :]                                          # [BH, L_Q]

    # top-k query selection (data-dependent glue, like torch .topk)
    _, index = lax.top_k(M, u)                               # [BH, u] int32

    scl = float(scale) if scale is not None else 1.0 / math.sqrt(D)

    # --- Kernel 2: gather top-u queries, softmax, attn @ V, scatter into base ---
    ctx_b, attn_b = pl.pallas_call(
        functools.partial(_context_kernel, scale=scl, u=u),
        out_shape=(jax.ShapeDtypeStruct((BH, L_Q, D), jnp.float32),
                   jax.ShapeDtypeStruct((BH, L_Q, L_V), jnp.float32)),
        grid_spec=pltpu.PrefetchScalarGridSpec(
            num_scalar_prefetch=1,
            grid=(BH,),
            in_specs=[pl.BlockSpec((1, L_Q, D), lambda g, idx: (g, 0, 0)),
                      pl.BlockSpec((1, L_K, D), lambda g, idx: (g, 0, 0)),
                      pl.BlockSpec((1, L_V, D), lambda g, idx: (g, 0, 0))],
            out_specs=[pl.BlockSpec((1, L_Q, D), lambda g, idx: (g, 0, 0)),
                       pl.BlockSpec((1, L_Q, L_V), lambda g, idx: (g, 0, 0))],
            scratch_shapes=[pltpu.VMEM((u, D), jnp.float32),    # gathered Q rows
                            pltpu.VMEM((u, D), jnp.float32),    # ctx rows
                            pltpu.VMEM((u, L_V), jnp.float32)]),  # attn rows
        compiler_params=pltpu.CompilerParams(
            dimension_semantics=("parallel",),
            vmem_limit_bytes=48 * 1024 * 1024),
    )(index, Qf, Kb, Vb)

    context = ctx_b.reshape(B, H, L_Q, D).transpose(0, 2, 1, 3)   # [B, L_Q, H, D]
    attn = attn_b.reshape(B, H, L_Q, L_V)                          # [B, H, L_V, L_V]
    return context, attn


# ------------------------------ pure-JAX reference ---------------------------- #

def prob_attention_ref(queries, keys, values, index_sample, *, factor=5, scale=None):
    """Reference mirroring the kernels' bf16-matmul / f32-accumulate numerics."""
    B, L_Q, H, D = queries.shape
    _, L_K, _, _ = keys.shape
    L_V = L_K
    Q = jnp.transpose(queries, (0, 2, 1, 3)).astype(jnp.bfloat16)
    K = jnp.transpose(keys, (0, 2, 1, 3)).astype(jnp.bfloat16)
    V = jnp.transpose(values, (0, 2, 1, 3)).astype(jnp.bfloat16)
    V32 = V.astype(jnp.float32)

    u = min(factor * int(math.ceil(math.log(L_Q))), L_Q)

    K_sample = K[:, :, index_sample, :]                              # [B,H,L_Q,Sk,D]
    QK_sample = jnp.einsum('bhqe,bhqse->bhqs', Q, K_sample,
                           preferred_element_type=jnp.float32)
    M = QK_sample.max(-1) - QK_sample.sum(-1) / L_K
    _, idx = lax.top_k(M, u)                                         # [B,H,u]

    Q_reduce = jnp.take_along_axis(Q, idx[..., None], axis=2)        # [B,H,u,D]
    scl = float(scale) if scale is not None else 1.0 / math.sqrt(D)
    scores = jnp.einsum('bhue,bhke->bhuk', Q_reduce, K,
                        preferred_element_type=jnp.float32) * scl
    attn = jax.nn.softmax(scores, axis=-1)
    ctx_top = jnp.einsum('bhuk,bhkd->bhud', attn, V32)

    V_mean = V32.mean(axis=2)                                        # [B,H,D]
    context = jnp.broadcast_to(V_mean[:, :, None, :], (B, H, L_Q, D))
    b_idx = jnp.arange(B)[:, None, None]
    h_idx = jnp.arange(H)[None, :, None]
    context = context.at[b_idx, h_idx, idx, :].set(ctx_top)

    attns = jnp.full((B, H, L_V, L_V), 1.0 / L_V, dtype=jnp.float32)
    attns = attns.at[b_idx, h_idx, idx, :].set(attn)
    return jnp.transpose(context, (0, 2, 1, 3)), attns


# ----------------------------------- main -------------------------------------- #

if __name__ == "__main__":
    B, L, H, D = 2, 16, 4, 32          # L_Q = L_K = L_V = 16
    factor = 5

    key = jax.random.PRNGKey(0)
    kq, kk, kv, ks = jax.random.split(key, 4)
    queries = jax.random.normal(kq, (B, L, H, D), jnp.float32)
    keys_arr = jax.random.normal(kk, (B, L, H, D), jnp.float32)
    values = jax.random.normal(kv, (B, L, H, D), jnp.float32)

    # analogue of torch.randint(L_K, (L_Q, sample_k)) -- deterministic here
    U_part = min(factor * int(math.ceil(math.log(L))), L)
    index_sample = jax.random.randint(ks, (L, U_part), 0, L)

    context, attn = prob_attention(queries, keys_arr, values, index_sample,
                                   factor=factor)
    jax.block_until_ready((context, attn))

    context_ref, attn_ref = prob_attention_ref(queries, keys_arr, values,
                                               index_sample, factor=factor)

    assert context.shape == (B, L, H, D)
    assert attn.shape == (B, H, L, L)
    assert jnp.allclose(context, context_ref, atol=2e-3, rtol=2e-3)
    assert jnp.allclose(attn, attn_ref, atol=2e-3, rtol=2e-3)

    print("KERNEL_OK")
</pallas_src>

<mosaic_0001>
module attributes {stable_mosaic.version = 11 : i64} {
  func.func @_sparsity_measure_kernel(%arg0: i32, %arg1: i32, %arg2: memref<16x16xbf16, #tpu.memory_space<vmem>>, %arg3: memref<1x16x32xf32, #tpu.memory_space<vmem>>, %arg4: memref<1x16x32xbf16, #tpu.memory_space<vmem>>, %arg5: memref<1x1x16xf32, #tpu.memory_space<vmem>>, %arg6: memref<1x16xf32, #tpu.memory_space<vmem>>, %arg7: memref<1x16xf32, #tpu.memory_space<vmem>>) attributes {dimension_semantics = [#tpu.dimension_semantics<parallel>, #tpu.dimension_semantics<arbitrary>], iteration_bounds = array<i64: 8, 1>, scalar_prefetch = 0 : i64, scratch_operands = 2 : i64, tpu.core_type = #tpu.core_type<tc>, window_params = [{transform_indices = @transform_0, window_bounds = array<i64: 16, 16>}, {transform_indices = @transform_1, window_bounds = array<i64: 1, 16, 32>}, {transform_indices = @transform_2, window_bounds = array<i64: 1, 16, 32>}, {transform_indices = @transform_3, window_bounds = array<i64: 1, 1, 16>}]} {
    %c0_i32 = arith.constant 0 : i32
    %0 = arith.cmpi eq, %arg1, %c0_i32 : i32
    %1 = arith.extui %0 : i1 to i32
    %c0_i32_0 = arith.constant 0 : i32
    %2 = arith.cmpi ne, %1, %c0_i32_0 : i32
    scf.if %2 {
      %cst_22 = arith.constant 0xFF800000 : f32
      %29 = vector.broadcast %cst_22 : f32 to vector<1x16xf32>
      %c0_23 = arith.constant 0 : index
      %c0_24 = arith.constant 0 : index
      %30 = vector.load %arg6[%c0_23, %c0_24] : memref<1x16xf32, #tpu.memory_space<vmem>>, vector<1x16xf32>
      tpu.vector_store %arg6[%c0_23, %c0_24], %29 {strides = array<i32>} : memref<1x16xf32, #tpu.memory_space<vmem>>, vector<1x16xf32>,
      %cst_25 = arith.constant 0.000000e+00 : f32
      %31 = vector.broadcast %cst_25 : f32 to vector<1x16xf32>
      %c0_26 = arith.constant 0 : index
      %c0_27 = arith.constant 0 : index
      %32 = vector.load %arg7[%c0_26, %c0_27] : memref<1x16xf32, #tpu.memory_space<vmem>>, vector<1x16xf32>
      tpu.vector_store %arg7[%c0_26, %c0_27], %31 {strides = array<i32>} : memref<1x16xf32, #tpu.memory_space<vmem>>, vector<1x16xf32>,
    } else {
    }
    %c0 = arith.constant 0 : index
    %c0_1 = arith.constant 0 : index
    %c0_2 = arith.constant 0 : index
    %3 = vector.load %arg3[%c0, %c0_1, %c0_2] : memref<1x16x32xf32, #tpu.memory_space<vmem>>, vector<1x16x32xf32>
    %4 = vector.shape_cast %3 : vector<1x16x32xf32> to vector<16x32xf32>
    %5 = arith.truncf %4 : vector<16x32xf32> to vector<16x32xbf16>
    %c0_3 = arith.constant 0 : index
    %c0_4 = arith.constant 0 : index
    %c0_5 = arith.constant 0 : index
    %6 = vector.load %arg4[%c0_3, %c0_4, %c0_5] : memref<1x16x32xbf16, #tpu.memory_space<vmem>>, vector<1x16x32xbf16>
    %7 = vector.shape_cast %6 : vector<1x16x32xbf16> to vector<16x32xbf16>
    %cst = arith.constant dense<0.000000e+00> : vector<16x16xf32>
    %8 = tpu.matmul %7, %5, %cst {dimension_numbers = #tpu.dot_dimension_numbers<[1], [1], [0], [0], [0, 0, 1, 0], [], []>} : vector<16x32xbf16>, vector<16x32xbf16>, vector<16x16xf32> -> vector<16x16xf32>
    %c0_6 = arith.constant 0 : index
    %c0_7 = arith.constant 0 : index
    %9 = vector.load %arg2[%c0_6, %c0_7] : memref<16x16xbf16, #tpu.memory_space<vmem>>, vector<16x16xbf16>
    %10 = arith.extf %9 : vector<16x16xbf16> to vector<16x16xf32>
    %c0_8 = arith.constant 0 : index
    %c0_9 = arith.constant 0 : index
    %11 = vector.load %arg7[%c0_8, %c0_9] : memref<1x16xf32, #tpu.memory_space<vmem>>, vector<1x16xf32>
    %12 = arith.mulf %8, %10 : vector<16x16xf32>
    %cst_10 = arith.constant dense<0.000000e+00> : vector<16xf32>
    %13 = vector.multi_reduction <add>, %12, %cst_10 [0] : vector<16x16xf32> to vector<16xf32>
    %14 = vector.shape_cast %13 : vector<16xf32> to vector<1x16xf32>
    %15 = arith.addf %11, %14 : vector<1x16xf32>
    %c0_11 = arith.constant 0 : index
    %c0_12 = arith.constant 0 : index
    %16 = vector.load %arg7[%c0_11, %c0_12] : memref<1x16xf32, #tpu.memory_space<vmem>>, vector<1x16xf32>
    tpu.vector_store %arg7[%c0_11, %c0_12], %15 {strides = array<i32>} : memref<1x16xf32, #tpu.memory_space<vmem>>, vector<1x16xf32>,
    %cst_13 = arith.constant 0.000000e+00 : f32
    %17 = vector.broadcast %cst_13 : f32 to vector<16x16xf32>
    %18 = arith.cmpf ogt, %10, %17 : vector<16x16xf32>
    %cst_14 = arith.constant 0xFF800000 : f32
    %19 = vector.broadcast %cst_14 : f32 to vector<16x16xf32>
    %20 = arith.select %18, %8, %19 : vector<16x16xi1>, vector<16x16xf32>
    %cst_15 = arith.constant dense<0xFF800000> : vector<16xf32>
    %21 = vector.multi_reduction <maximumf>, %20, %cst_15 [0] : vector<16x16xf32> to vector<16xf32>
    %22 = vector.shape_cast %21 : vector<16xf32> to vector<1x16xf32>
    %c0_16 = arith.constant 0 : index
    %c0_17 = arith.constant 0 : index
    %23 = vector.load %arg6[%c0_16, %c0_17] : memref<1x16xf32, #tpu.memory_space<vmem>>, vector<1x16xf32>
    %24 = arith.maximumf %23, %22 : vector<1x16xf32>
    %c0_18 = arith.constant 0 : index
    %c0_19 = arith.constant 0 : index
    %25 = vector.load %arg6[%c0_18, %c0_19] : memref<1x16xf32, #tpu.memory_space<vmem>>, vector<1x16xf32>
    tpu.vector_store %arg6[%c0_18, %c0_19], %24 {strides = array<i32>} : memref<1x16xf32, #tpu.memory_space<vmem>>, vector<1x16xf32>,
    %c0_i32_20 = arith.constant 0 : i32
    %26 = arith.cmpi eq, %arg1, %c0_i32_20 : i32
    %27 = arith.extui %26 : i1 to i32
    %c0_i32_21 = arith.constant 0 : i32
    %28 = arith.cmpi ne, %27, %c0_i32_21 : i32
    scf.if %28 {
      %c0_22 = arith.constant 0 : index
      %c0_23 = arith.constant 0 : index
      %29 = vector.load %arg6[%c0_22, %c0_23] : memref<1x16xf32, #tpu.memory_space<vmem>>, vector<1x16xf32>
      %c0_24 = arith.constant 0 : index
      %c0_25 = arith.constant 0 : index
      %30 = vector.load %arg7[%c0_24, %c0_25] : memref<1x16xf32, #tpu.memory_space<vmem>>, vector<1x16xf32>
      %cst_26 = arith.constant 6.250000e-02 : f32
      %31 = vector.broadcast %cst_26 : f32 to vector<1x16xf32>
      %32 = arith.mulf %30, %31 : vector<1x16xf32>
      %33 = arith.subf %29, %32 : vector<1x16xf32>
      %c0_27 = arith.constant 0 : index
      %c0_28 = arith.constant 0 : index
      %c0_29 = arith.constant 0 : index
      %34 = vector.load %arg5[%c0_27, %c0_28, %c0_29] : memref<1x1x16xf32, #tpu.memory_space<vmem>>, vector<1x1x16xf32>
      %35 = vector.shape_cast %34 : vector<1x1x16xf32> to vector<1x16xf32>
      %36 = vector.shape_cast %33 : vector<1x16xf32> to vector<1x1x16xf32>
      tpu.vector_store %arg5[%c0_27, %c0_28, %c0_29], %36 {strides = array<i32>} : memref<1x1x16xf32, #tpu.memory_space<vmem>>, vector<1x1x16xf32>,
    } else {
    }
    return
  }
  func.func @transform_0(%arg0: i32, %arg1: i32) -> (i32, i32) {
    %c0_i32 = arith.constant 0 : i32
    %c0_i32_0 = arith.constant 0 : i32
    return %arg1, %c0_i32 : i32, i32
  }
  func.func @transform_1(%arg0: i32, %arg1: i32) -> (i32, i32, i32) {
    %c0_i32 = arith.constant 0 : i32
    %c0_i32_0 = arith.constant 0 : i32
    %c0_i32_1 = arith.constant 0 : i32
    return %arg0, %c0_i32, %c0_i32_0 : i32, i32, i32
  }
  func.func @transform_2(%arg0: i32, %arg1: i32) -> (i32, i32, i32) {
    %c0_i32 = arith.constant 0 : i32
    %c0_i32_0 = arith.constant 0 : i32
    return %arg0, %arg1, %c0_i32 : i32, i32, i32
  }
  func.func @transform_3(%arg0: i32, %arg1: i32) -> (i32, i32, i32) {
    %c0_i32 = arith.constant 0 : i32
    %c0_i32_0 = arith.constant 0 : i32
    %c0_i32_1 = arith.constant 0 : i32
    return %arg0, %c0_i32, %c0_i32_0 : i32, i32, i32
  }
}

</mosaic_0001>

<llo_original>
// kernel: tpu_custom_call.1
$region0: #{tpu_custom_call.1}
  #allocation0 [shape = 'u32[]', space=smem, size = 0x4, offset = 0x4, fixed_abs, tag = 'smem constant byte address 0x4 - core index']
  #allocation1 [shape = 'u32[144,128]{1,0:T(1,128)}', space=vmem, size = 0x12000, scoped, tag = 'internal scratch']
  #allocation2 [shape = 'f32[1,16]{1,0:T(1,128)}', space=vmem, size = 0x200, scoped, tag = 'scratch operand']
  #allocation3 [shape = 'f32[1,16]{1,0:T(1,128)}', space=vmem, size = 0x200, scoped, tag = 'scratch operand']
  %s0 = inlined_call_operand.hbm [shape: bf16[16,16], index: 0, kind: input, shape index: {}]
  %s1 = inlined_call_operand.hbm [shape: f32[8,16,32], index: 1, kind: input, shape index: {}]
  %s2 = inlined_call_operand.hbm [shape: bf16[8,16,32], index: 2, kind: input, shape index: {}]
  %s3 = inlined_call_operand.hbm [shape: f32[8,1,16], index: 3, kind: output, shape index: {}]
  %s4 = sld [smem:[#allocation0]]
  $region65: #{tpu_custom_call.1} parent=0
    _
  %s6 = ssub.s32 1, %s4
  %s7 = scalar_select 0, %s6, %s4
  $region1: #{tpu_custom_call.1} parent=0
    #allocation4 [shape = 'u8[4096]{0}', space=vmem, size = 0x1000, scoped, tag = 'input window, operand 0, single buffered']
    #allocation5 [shape = 's32[2]{0}', space=sflag, size = 0x8, scoped, tag = 'scoped memory for tpu_custom_call.1']
    #allocation6 [shape = 's32[2]{0}', space=sflag, size = 0x8, scoped, tag = 'scoped memory for tpu_custom_call.1']
    #allocation7 [shape = 'u8[16384]{0}', space=vmem, size = 0x4000, scoped, tag = 'input window, operand 1']
    #allocation8 [shape = 's32[2]{0}', space=sflag, size = 0x8, scoped, tag = 'scoped memory for tpu_custom_call.1']
    #allocation9 [shape = 'u8[8192]{0}', space=vmem, size = 0x2000, scoped, tag = 'input window, operand 2']
    #allocation10 [shape = 'u8[1024]{0}', space=vmem, size = 0x400, scoped, tag = 'output window, operand 0']
    %8 = vsyncpa [#allocation5], 0
    %9 = vsyncpa [#allocation8], 0
    %s10 = scalar_lea.sflag [#allocation8], 1
    %11 = vsyncpa %s10, 0
    %12 = vsyncpa [#allocation6], 0
    %s13 = scalar_lea.sflag [#allocation6], 1
    %14 = vsyncpa %s13, 0
    loop: start=0, step=1, limit=10
    $region2: #{tpu_custom_call.1} parent=1 // loop_pre_header
      _
    $region3: #{tpu_custom_call.1} parent=1 // loop_header
      %s16 = sphi 0, %s20
      %p17 = scmp.ge.s32.totalorder %s16, 10
      %s23 = sphi 0, %s35
      %s24 = sphi 0, %s31
      %s25 = sphi 0, %s23
      %s26 = sphi 0, %s24
      %s27 = sphi 0, %s25
      %s28 = sphi 0, %s26
      %s38 = sphi 0, %s40
      %s41 = sphi 0, %s38
      %s42 = sphi 0, %s41
      %s58 = sphi 0, %s42
      %s64 = sphi 0, %s66
      %s67 = sphi 0, %s64
      %s68 = sphi 0, %s67
      %s84 = sphi 0, %s68
      %s92 = sphi 0, %s94
      %s95 = sphi 0, %s92
      %s96 = sphi 0, %s95
      %s112 = sphi 0, %s96
      %s118 = sphi 0, %s120
      %s121 = sphi 0, %s118
      %s122 = sphi 0, %s121
      %s138 = sphi 0, %s122
    $region4: #{tpu_custom_call.1} parent=1 // loop_header_branch
      %19 = sbr.rel (%p17) target = $region8
    $region5: #{tpu_custom_call.1} parent=1 // loop_body
      %s21 = ssub.s32 %s16, 1
      %s22 = ssub.s32 %s16, 2
      %s29 = sadd.s32 1, %s24
      %p30 = scmp.ge.s32.totalorder %s29, 1
      %s31 = scalar_select %p30, 0, %s29
      %s32 = sadd.s32 1, %s23
      %s33 = scalar_select %p30, %s32, %s23
      %p34 = scmp.ge.s32.totalorder %s33, 8
      %s35 = scalar_select %p34, 0, %s33
      %s36 = ssub.s32 %s24, %s31
      %p37 = scmp.eq.s32.totalorder %s36, 0
      %s39 = sadd.s32 %s38, 1
      %s40 = scalar_select %p37, %s38, %s39
      %p43 = pneg %p37
      %p44 = scmp.eq.s32.totalorder %s16, 7
      %p45 = por %p43, %p44
      %p46 = scmp.ne.s32.totalorder %s38, %s41
      %p47 = scmp.eq.s32.totalorder %s16, 0
      %p48 = por %p46, %p47
      %p49 = scmp.ne.s32.totalorder %s38, %s41
      %p50 = scmp.eq.s32.totalorder %s21, 7
      %p51 = por %p49, %p50
      %p52 = scmp.ne.s32.totalorder %s41, %s42
      %p53 = scmp.eq.s32.totalorder %s21, 0
      %p54 = por %p52, %p53
      %p55 = scmp.ne.s32.totalorder %s41, %s42
      %p56 = scmp.eq.s32.totalorder %s22, 7
      %p57 = por %p55, %p56
      %p59 = scmp.ne.s32.totalorder %s42, %s58
      %p60 = scmp.eq.s32.totalorder %s22, 0
      %p61 = por %p59, %p60
      %s62 = ssub.s32 %s23, %s35
      %p63 = scmp.eq.s32.totalorder %s62, 0
      %s65 = sadd.s32 %s64, 1
      %s66 = scalar_select %p63, %s64, %s65
      %p69 = pneg %p63
      %p70 = scmp.eq.s32.totalorder %s16, 7
      %p71 = por %p69, %p70
      %p72 = scmp.ne.s32.totalorder %s64, %s67
      %p73 = scmp.eq.s32.totalorder %s16, 0
      %p74 = por %p72, %p73
      %p75 = scmp.ne.s32.totalorder %s64, %s67
      %p76 = scmp.eq.s32.totalorder %s21, 7
      %p77 = por %p75, %p76
      %p78 = scmp.ne.s32.totalorder %s67, %s68
      %p79 = scmp.eq.s32.totalorder %s21, 0
      %p80 = por %p78, %p79
      %p81 = scmp.ne.s32.totalorder %s67, %s68
      %p82 = scmp.eq.s32.totalorder %s22, 7
      %p83 = por %p81, %p82
      %p85 = scmp.ne.s32.totalorder %s68, %s84
      %p86 = scmp.eq.s32.totalorder %s22, 0
      %p87 = por %p85, %p86
      %s88 = ssub.s32 %s23, %s35
      %s89 = ssub.s32 %s24, %s31
      %s90 = sor.u32 %s88, %s89
      %p91 = scmp.eq.s32.totalorder %s90, 0
      %s93 = sadd.s32 %s92, 1
      %s94 = scalar_select %p91, %s92, %s93
      %p97 = pneg %p91
      %p98 = scmp.eq.s32.totalorder %s16, 7
      %p99 = por %p97, %p98
      %p100 = scmp.ne.s32.totalorder %s92, %s95
      %p101 = scmp.eq.s32.totalorder %s16, 0
      %p102 = por %p100, %p101
      %p103 = scmp.ne.s32.totalorder %s92, %s95
      %p104 = scmp.eq.s32.totalorder %s21, 7
      %p105 = por %p103, %p104
      %p106 = scmp.ne.s32.totalorder %s95, %s96
      %p107 = scmp.eq.s32.totalorder %s21, 0
      %p108 = por %p106, %p107
      %p109 = scmp.ne.s32.totalorder %s95, %s96
      %p110 = scmp.eq.s32.totalorder %s22, 7
      %p111 = por %p109, %p110
      %p113 = scmp.ne.s32.totalorder %s96, %s112
      %p114 = scmp.eq.s32.totalorder %s22, 0
      %p115 = por %p113, %p114
      %s116 = ssub.s32 %s23, %s35
      %p117 = scmp.eq.s32.totalorder %s116, 0
      %s119 = sadd.s32 %s118, 1
      %s120 = scalar_select %p117, %s118, %s119
      %p123 = pneg %p117
      %p124 = scmp.eq.s32.totalorder %s16, 7
      %p125 = por %p123, %p124
      %p126 = scmp.ne.s32.totalorder %s118, %s121
      %p127 = scmp.eq.s32.totalorder %s16, 0
      %p128 = por %p126, %p127
      %p129 = scmp.ne.s32.totalorder %s118, %s121
      %p130 = scmp.eq.s32.totalorder %s21, 7
      %p131 = por %p129, %p130
      %p132 = scmp.ne.s32.totalorder %s121, %s122
      %p133 = scmp.eq.s32.totalorder %s21, 0
      %p134 = por %p132, %p133
      %p135 = scmp.ne.s32.totalorder %s121, %s122
      %p136 = scmp.eq.s32.totalorder %s22, 7
      %p137 = por %p135, %p136
      %p139 = scmp.ne.s32.totalorder %s122, %s138
      %p140 = scmp.eq.s32.totalorder %s22, 0
      %p141 = por %p139, %p140
      %p142 = scmp.le.s32.totalorder 1, %s16
      %p143 = scmp.lt.s32.totalorder %s16, 9
      %p144 = pnand %p142, %p143
      %p145 = pneg %p144
      // Predicated region
      $region9: #{tpu_custom_call.1} parent=5 // pred_check
        _
      $region10: #{tpu_custom_call.1} parent=5 // pred_check_branch
        %147 = sbr.rel (%p144) target = $region12
      $region11: #{tpu_custom_call.1} parent=5 // pred_region
        %s148 = ssub.s32 %s16, 1
        // Predicated region
        $region13: #{tpu_custom_call.1} parent=11 // pred_check
          %p149 = pneg %p54
        $region14: #{tpu_custom_call.1} parent=11 // pred_check_branch
          %151 = sbr.rel (%p149) target = $region16
        $region15: #{tpu_custom_call.1} parent=11 // pred_region
          %s152 = smul.u32 2, %s26
          %s154 = ssub.s32 128, 128
          %155 = vsyncadd [#allocation5], %s154
          %s156 = smul.addr %s152, 64
          %s157 = scalar_lea.hbm %s0, %s156
          %s158 = sshll.u32 [#allocation4], 4
          %s159 = int_to_ptr.vmem [resolvable:$true] %s158
          %164 = dma.hbm_to_vmem [thread:$0]  %s157, 128, %s159, [#allocation5], 64, 64, 4
        $region16: #{tpu_custom_call.1} parent=11 // pred_fallthru
          _
      $region12: #{tpu_custom_call.1} parent=5 // pred_fallthru
        _
      %p165 = scmp.lt.s32.totalorder %s16, 8
      // Predicated region
      $region17: #{tpu_custom_call.1} parent=5 // pred_check
        %p166 = pneg %p165
      $region18: #{tpu_custom_call.1} parent=5 // pred_check_branch
        %168 = sbr.rel (%p166) target = $region20
      $region19: #{tpu_custom_call.1} parent=5 // pred_region
        // Predicated region
        $region21: #{tpu_custom_call.1} parent=19 // pred_check
          %p169 = pneg %p74
        $region22: #{tpu_custom_call.1} parent=19 // pred_check_branch
          %171 = sbr.rel (%p169) target = $region24
        $region23: #{tpu_custom_call.1} parent=19 // pred_region
          %s172 = sand.u32 %s16, 1
          %s173 = scalar_lea.sflag [#allocation8], %s172
          %s174 = sand.u32 %s64, 1
          %s175 = smul.addr %s174, 16
          %s176 = scalar_lea.vmem [#allocation7], %s175
          %s178 = ssub.s32 256, 256
          %179 = vsyncadd %s173, %s178
          %s180 = smul.addr %s23, 2
          %s181 = smul.addr %s180, 128
          %s182 = scalar_lea.hbm %s1, %s181
          %s183 = sshll.u32 %s176, 4
          %s184 = int_to_ptr.vmem [resolvable:$true] %s183
          %189 = dma.hbm_to_vmem [thread:$0]  %s182, 256, %s184, %s173, 128, 128, 8
        $region24: #{tpu_custom_call.1} parent=19 // pred_fallthru
          _
        // Predicated region
        $region25: #{tpu_custom_call.1} parent=19 // pred_check
          %p190 = pneg %p102
        $region26: #{tpu_custom_call.1} parent=19 // pred_check_branch
          %192 = sbr.rel (%p190) target = $region28
        $region27: #{tpu_custom_call.1} parent=19 // pred_region
          %s193 = sand.u32 %s16, 1
          %s194 = scalar_lea.sflag [#allocation8], %s193
          %s195 = sand.u32 %s92, 1
          %s196 = smul.addr %s195, 8
          %s197 = scalar_lea.vmem [#allocation9], %s196
          %s198 = smul.u32 2, %s24
          %s200 = ssub.s32 128, 128
          %201 = vsyncadd %s194, %s200
          %s202 = smul.addr %s23, 2
          %s203 = sadd.s32 %s198, %s202
          %s204 = smul.addr %s203, 64
          %s205 = scalar_lea.hbm %s2, %s204
          %s206 = sshll.u32 %s197, 4
          %s207 = int_to_ptr.vmem [resolvable:$true] %s206
          %212 = dma.hbm_to_vmem [thread:$0]  %s205, 128, %s207, %s194, 64, 64, 4
        $region28: #{tpu_custom_call.1} parent=19 // pred_fallthru
          _
      $region20: #{tpu_custom_call.1} parent=5 // pred_fallthru
        _
      %p213 = scmp.le.s32.totalorder 1, %s16
      %p214 = scmp.lt.s32.totalorder %s16, 9
      %p215 = pnand %p213, %p214
      %p216 = pneg %p215
      // Predicated region
      $region29: #{tpu_custom_call.1} parent=5 // pred_check
        _
      $region30: #{tpu_custom_call.1} parent=5 // pred_check_branch
        %218 = sbr.rel (%p215) target = $region32
      $region31: #{tpu_custom_call.1} parent=5 // pred_region
        %s219 = ssub.s32 %s16, 1
        // Predicated region
        $region33: #{tpu_custom_call.1} parent=31 // pred_check
          %p220 = pneg %p54
        $region34: #{tpu_custom_call.1} parent=31 // pred_check_branch
          %222 = sbr.rel (%p220) target = $region36
        $region35: #{tpu_custom_call.1} parent=31 // pred_region
          %223 = dma.done [#allocation5], 128
        $region36: #{tpu_custom_call.1} parent=31 // pred_fallthru
          _
        %s224 = sand.u32 %s21, 1
        %s225 = scalar_lea.sflag [#allocation8], %s224
        %s226 = sand.u32 %s67, 1
        %s227 = smul.addr %s226, 16
        %s228 = scalar_lea.vmem [#allocation7], %s227
        // Predicated region
        $region37: #{tpu_custom_call.1} parent=31 // pred_check
          %p229 = pneg %p80
        $region38: #{tpu_custom_call.1} parent=31 // pred_check_branch
          %231 = sbr.rel (%p229) target = $region40
        $region39: #{tpu_custom_call.1} parent=31 // pred_region
          %232 = dma.done %s225, 256
        $region40: #{tpu_custom_call.1} parent=31 // pred_fallthru
          _
        %s233 = sand.u32 %s21, 1
        %s234 = scalar_lea.sflag [#allocation8], %s233
        %s235 = sand.u32 %s95, 1
        %s236 = smul.addr %s235, 8
        %s237 = scalar_lea.vmem [#allocation9], %s236
        // Predicated region
        $region41: #{tpu_custom_call.1} parent=31 // pred_check
          %p238 = pneg %p108
        $region42: #{tpu_custom_call.1} parent=31 // pred_check_branch
          %240 = sbr.rel (%p238) target = $region44
        $region43: #{tpu_custom_call.1} parent=31 // pred_region
          %241 = dma.done %s234, 128
        $region44: #{tpu_custom_call.1} parent=31 // pred_fallthru
          _
        %p242 = pneg %p54
        %p243 = pneg %p51
        %s244 = sand.u32 %s21, 1
        %s245 = scalar_lea.sflag [#allocation8], %s244
        %s246 = sand.u32 %s67, 1
        %s247 = smul.addr %s246, 16
        %s248 = scalar_lea.vmem [#allocation7], %s247
        %p249 = pneg %p80
        %p250 = pneg %p77
        %s251 = sand.u32 %s21, 1
        %s252 = scalar_lea.sflag [#allocation8], %s251
        %s253 = sand.u32 %s95, 1
        %s254 = smul.addr %s253, 8
        %s255 = scalar_lea.vmem [#allocation9], %s254
        %p256 = pneg %p108
        %p257 = pneg %p105
        %p258 = pneg %p134
        %p259 = pneg %p131
        %s260 = sand.u32 %s121, 1
        %s261 = scalar_lea.sflag [#allocation6], %s260
        %s262 = sand.u32 %s121, 1
        %s263 = scalar_lea.vmem [#allocation10], %s262
        %s264 = smul.u32 2, %s26
        %s265 = smul.u32 2, %s26
        %p267 = scmp.eq.s32.totalorder %s26, 0
        // Predicated region
        $region45: #{tpu_custom_call.1} parent=31 // pred_check
          %p268 = pneg %p267
        $region46: #{tpu_custom_call.1} parent=31 // pred_check_branch
          %270 = sbr.rel (%p268) target = $region48
        $region47: #{tpu_custom_call.1} parent=31 // pred_region
          %vm271 = vcmask 122880
          %272 = vst.msk [vmem:[#allocation2] sm:$0x1] %vm271, -inf
          %273 = vst.msk [vmem:[#allocation3] sm:$0x1] %vm271, 0.0
        $region48: #{tpu_custom_call.1} parent=31 // pred_fallthru
          _
        %v274 = vld [vmem:[%s228] sm:$0xff]
        %v275 = vld [vmem:[%s228 + $0x8] sm:$0xff]
        %v276 = vpack.c.bf16 %v275, %v274
        %v277 = vld [vmem:[%s237] sm:$0xf]
        %v278 = vld [vmem:[%s237 + $0x4] sm:$0xf]
        %v281 = vunpack.c.l.b16 %v277
        %v282 = vunpack.c.l.b16 %v278
        %v283 = vpack.c.b16 %v282, %v281
        %vm284 = vcmask 261120
        %v286 = vsel %vm284, %v283, 0
        %v289 = vsel %vm284, %v276, 0
        %291 = vmatprep.subr.bf16.mxu0 0
        %292 = vmatpush1.bf16.xpose.msra.mxu0 %v289
        %293 = vmatprep.subr.bf16.mxu0 0
        %294 = vmatpush1.bf16.xpose.msra.mxu0 0
        %295 = vmatprep.subr.bf16.mxu0 0
        %296 = vmatpush1.bf16.xpose.msra.mxu0 0
        %297 = vmatprep.subr.bf16.mxu0 0
        %298 = vmatpush1.bf16.xpose.msra.mxu0 0
        %299 = vmatprep.subr.bf16.mxu0 0
        %300 = vmatpush1.bf16.xpose.msra.mxu0 0
        %301 = vmatprep.subr.bf16.mxu0 0
        %302 = vmatpush1.bf16.xpose.msra.mxu0 0
        %303 = vmatprep.subr.bf16.mxu0 0
        %304 = vmatpush1.bf16.xpose.msra.mxu0 0
        %305 = vmatprep.subr.bf16.mxu0 0
        %306 = vmatpush1.bf16.xpose.msra.mxu0 0
        %307 = vmatprep.subr.bf16.mxu0 0
        %308 = vmatpush1.bf16.xpose.msra.mxu0 0
        %309 = vmatprep.subr.bf16.mxu0 0
        %310 = vmatpush1.bf16.xpose.msra.mxu0 0
        %311 = vmatprep.subr.bf16.mxu0 0
        %312 = vmatpush1.bf16.xpose.msra.mxu0 0
        %313 = vmatprep.subr.bf16.mxu0 0
        %314 = vmatpush1.bf16.xpose.msra.mxu0 0
        %315 = vmatprep.subr.bf16.mxu0 0
        %316 = vmatpush1.bf16.xpose.msra.mxu0 0
        %317 = vmatprep.subr.bf16.mxu0 0
        %318 = vmatpush1.bf16.xpose.msra.mxu0 0
        %319 = vmatprep.subr.bf16.mxu0 0
        %320 = vmatpush1.bf16.xpose.msra.mxu0 0
        %321 = vmatprep.subr.bf16.mxu0 0
        %322 = vmatpush1.bf16.xpose.msra.mxu0 0
        %323 = vmatprep.mubr.bf16.mxu0 0
        %324 = vmatmul.mubr.bf16.gmra.mrb[0].mxu0 %v286
        %v325 = vpop.f32.mrb[0].mxu0
        %v326 = vadd.f32 0.0, %v325
        %v327 = vpop.f32.mrb[0].mxu0
        %v328 = vpop.f32.mrb[0].mxu0
        %v329 = vadd.f32 0.0, %v328
        %v330 = vpop.f32.mrb[0].mxu0
        %331 = vdwg.mxu0
        %v332 = vld [vmem:[#allocation4] sm:$0xf]
        %v333 = vld [vmem:[#allocation4 + $0x4] sm:$0xf]
        %v334 = vunpack.c.l.bf16 %v332
        %v335 = vunpack.c.l.bf16 %v333
        %v336 = vld [vmem:[#allocation3] sm:$0x1]
        %v337 = vmul.f32 %v326, %v334
        %v338 = vmul.f32 %v329, %v335
        %vm339 = vcmask 130048
        %v340 = vsel %vm339, %v337, 0.0
        %v341 = vsel %vm339, %v338, 0.0
        %v342 = vadd.f32 %v340, %v341
        %v343 = vrot.slane %v342, 4
        %v344 = vadd.f32 %v342, %v343
        %v345 = vrot.slane %v344, 2
        %v346 = vadd.f32 %v344, %v345
        %v347 = vrot.slane %v346, 1
        %v348 = vadd.f32 %v346, %v347
        %v349 = vadd.f32 %v336, %v348
        %vm350 = vcmask 122880
        %351 = vst.msk [vmem:[#allocation3] sm:$0x1] %vm350, %v349
        %vm352 = vcmp.gt.f32.partialorder %v334, 0.0
        %vm353 = vcmp.gt.f32.partialorder %v335, 0.0
        %v354 = vsel %vm352, %v326, -inf
        %v355 = vsel %vm353, %v329, -inf
        %v356 = vsel %vm339, %v354, -inf
        %v357 = vsel %vm339, %v355, -inf
        %v358 = vmax.f32 %v356, %v357
        %v359 = vrot.slane %v358, 4
        %v360 = vmax.f32 %v358, %v359
        %v361 = vrot.slane %v360, 2
        %v362 = vmax.f32 %v360, %v361
        %v363 = vrot.slane %v362, 1
        %v364 = vmax.f32 %v362, %v363
        %v365 = vld [vmem:[#allocation2] sm:$0x1]
        %v366 = vmax.f32 %v365, %v364
        %367 = vst.msk [vmem:[#allocation2] sm:$0x1] %vm350, %v366
        // Predicated region
        $region49: #{tpu_custom_call.1} parent=31 // pred_check
          %p368 = pneg %p267
        $region50: #{tpu_custom_call.1} parent=31 // pred_check_branch
          %370 = sbr.rel (%p368) target = $region52
        $region51: #{tpu_custom_call.1} parent=31 // pred_region
          %v371 = vld [vmem:[#allocation2] sm:$0x1]
          %v372 = vld [vmem:[#allocation3] sm:$0x1]
          %v373 = vmul.f32 %v372, 0.0625
          %v374 = vsub.f32 %v371, %v373
          %375 = vst.msk [vmem:[%s263] sm:$0x1] %vm350, %v374
        $region52: #{tpu_custom_call.1} parent=31 // pred_fallthru
          _
        %s376 = sand.u32 %s121, 1
        %s377 = scalar_lea.sflag [#allocation6], %s376
        %s378 = sand.u32 %s121, 1
        %s379 = scalar_lea.vmem [#allocation10], %s378
        // Predicated region
        $region53: #{tpu_custom_call.1} parent=31 // pred_check
          %p380 = pneg %p131
        $region54: #{tpu_custom_call.1} parent=31 // pred_check_branch
          %382 = sbr.rel (%p380) target = $region56
        $region55: #{tpu_custom_call.1} parent=31 // pred_region
          %s384 = ssub.s32 16, 16
          %385 = vsyncadd %s377, %s384
          %s386 = smul.addr %s25, 16
          %s387 = scalar_lea.hbm %s3, %s386
          %s389 = sshll.u32 %s379, 4
          %s390 = int_to_ptr.vmem [resolvable:$true] %s389
          %392 = dma.vmem_to_hbm [thread:$0]  %s390, 16, %s387, %s377
        $region56: #{tpu_custom_call.1} parent=31 // pred_fallthru
          _
      $region32: #{tpu_custom_call.1} parent=5 // pred_fallthru
        _
      %p393 = scmp.le.s32.totalorder 2, %s16
      // Predicated region
      $region57: #{tpu_custom_call.1} parent=5 // pred_check
        %p394 = pneg %p393
      $region58: #{tpu_custom_call.1} parent=5 // pred_check_branch
        %396 = sbr.rel (%p394) target = $region60
      $region59: #{tpu_custom_call.1} parent=5 // pred_region
        %s397 = ssub.s32 %s16, 2
        // Predicated region
        $region61: #{tpu_custom_call.1} parent=59 // pred_check
          %p398 = pneg %p137
        $region62: #{tpu_custom_call.1} parent=59 // pred_check_branch
          %400 = sbr.rel (%p398) target = $region64
        $region63: #{tpu_custom_call.1} parent=59 // pred_region
          %s401 = sand.u32 %s122, 1
          %s402 = scalar_lea.sflag [#allocation6], %s401
          %s403 = sand.u32 %s122, 1
          %s404 = scalar_lea.vmem [#allocation10], %s403
          %405 = dma.done %s402, 16
        $region64: #{tpu_custom_call.1} parent=59 // pred_fallthru
          _
      $region60: #{tpu_custom_call.1} parent=5 // pred_fallthru
        _
    $region6: #{tpu_custom_call.1} parent=1 // loop_footer
      %s20 = sadd.s32 1, %s16
    $region7: #{tpu_custom_call.1} parent=1 // loop_footer_branch
      %15 = sbr.rel target = $region3
    $region8: #{tpu_custom_call.1} parent=1 // loop_exit
      _
    %406 = vsyncpa [#allocation5], 1
    %s407 = scalar_lea.sflag [#allocation5], 1
    %408 = vsyncpa %s407, 1
    %409 = vsyncpa [#allocation8], 1
    %s410 = scalar_lea.sflag [#allocation8], 1
    %411 = vsyncpa %s410, 1
    %412 = vsyncpa [#allocation6], 1
    %s413 = scalar_lea.sflag [#allocation6], 1
    %414 = vsyncpa %s413, 1

</llo_original>
